<compile_context>
chip_gen: v5e
topology: v5e:2x2
jax: 0.10.0
libtpu: 0.0.40
codegen_flags: <defaults>
</compile_context>

<pallas_src>
import functools

import jax
import jax.numpy as jnp
from jax.experimental import pallas as pl
from jax.experimental.pallas import tpu as pltpu


def _round_up(x, m):
    return ((x + m - 1) // m) * m


_VMEM_BUDGET_BYTES = 44 * 1024 * 1024   # tile budget: fits v7x's 64 MiB/TC w/ headroom
_VMEM_LIMIT_BYTES = 64 * 1024 * 1024    # raise v5e/v6e scoped defaults; <= v7x physical


def _patch_embed_kernel(p_ref, w_ref, b_ref, o_ref):
    # p_ref: (Mt, Kp)  w_ref: (Kp, Ep)  b_ref: (1, Ep) f32  o_ref: (Mt, Ep)
    acc = jnp.dot(p_ref[...], w_ref[...], preferred_element_type=jnp.float32)
    o_ref[...] = (acc + b_ref[...]).astype(o_ref.dtype)


def _max_rows_for_vmem(Kp, Ep, sz_in, sz_out):
    """Largest M-tile (rows) whose pipeline buffers fit the VMEM budget."""
    # Double-buffered streamed patches + double-buffered output tile; resident
    # weight/bias conservatively counted double-buffered (see TODO above).
    fixed = 2 * Kp * Ep * sz_in + 2 * 8 * Ep * 4
    per_row = 2 * (Kp * sz_in + Ep * sz_out)
    rows = (_VMEM_BUDGET_BYTES - fixed) // per_row
    return max(8, (rows // 8) * 8)


def _pick_m_tile(M, cap):
    """Biggest tile <= cap; prefer an exact divisor of M (no pad / no strip)."""
    if M <= cap:
        return M                       # single step; full-array block is legal
    cap8 = max(8, (cap // 8) * 8)
    for mt in range(cap8, 7, -8):      # multiple of 8 sublanes, divides M
        if M % mt == 0:
            return mt
    return cap8                        # fall back: pad M up to a multiple


@functools.partial(
    jax.jit,
    static_argnames=("patch_size", "m_tile", "compute_dtype", "out_dtype"))
def patch_embedding(x, weight, bias, patch_size, *, m_tile=512,
                    compute_dtype=jnp.bfloat16, out_dtype=None):
    """x: [B, C, H, W] (NCHW, like PyTorch).  weight: [E, C, P, P].  bias: [E].

    Returns [B, n_patches, E], identical to proj(x).flatten(2).transpose(1, 2).
    compute_dtype feeds the MXU (bf16 default — native on v5e/v6e/v7x);
    accumulation and the bias add are always f32.  out_dtype defaults to
    x.dtype (pass bf16 on v5e to halve vst / output HBM pressure if tolerated).
    """
    B, C, H, W = x.shape
    E = weight.shape[0]
    P = patch_size
    nh, nw = H // P, W // P
    N = nh * nw
    K = C * P * P
    M = B * N

    cdt = compute_dtype if compute_dtype is not None else x.dtype
    odt = out_dtype if out_dtype is not None else x.dtype
    sz_in = jnp.dtype(cdt).itemsize
    sz_out = jnp.dtype(odt).itemsize

    # --- layout glue (left to XLA; allow_input_fusion below lets it fuse into
    # the pallas_call operand): non-overlapping patches, channels-first.
    # [B,C,nh,P,nw,P] -> [B,nh,nw,C,P,P] -> [M,K]
    patches = x.reshape(B, C, nh, P, nw, P).transpose(0, 2, 4, 1, 3, 5).reshape(M, K)
    w_mat = jnp.transpose(weight.reshape(E, K))            # [K, E]

    # --- contraction dim: pad K to a multiple of 128 when overhead is small.
    Kp = _round_up(K, 128)
    if Kp != K and (Kp - K) * 4 > K:                        # >25% pad: skip
        Kp = K
    if Kp != K:
        patches = jnp.pad(patches, ((0, 0), (0, Kp - K)))
        w_mat = jnp.pad(w_mat, ((0, Kp - K), (0, 0)))

    # --- lane-dense output: pad E to a multiple of 128 (no-op when E%128==0).
    Ep = _round_up(E, 128)
    if Ep != E:
        w_mat = jnp.pad(w_mat, ((0, 0), (0, Ep - E)))
        bias = jnp.pad(bias, (0, Ep - E))
    b_mat = bias.reshape(1, Ep).astype(jnp.float32)

    # --- M tile: as large as the VMEM budget allows, preferring a divisor of M.
    cap = min(m_tile, _max_rows_for_vmem(Kp, Ep, sz_in, sz_out))
    Mt = _pick_m_tile(M, cap)
    Mp = _round_up(M, Mt)
    if Mp != M:
        patches = jnp.pad(patches, ((0, Mp - M), (0, 0)))

    patches = patches.astype(cdt)
    w_mat = w_mat.astype(cdt)

    cost = pl.CostEstimate(
        flops=2 * Mp * Kp * Ep,
        transcendentals=0,
        bytes_accessed=(Mp * Kp * sz_in + Kp * Ep * sz_in + Ep * 4
                        + Mp * Ep * sz_out),
    )

    out = pl.pallas_call(
        _patch_embed_kernel,
        out_shape=jax.ShapeDtypeStruct((Mp, Ep), odt),
        grid_spec=pltpu.PrefetchScalarGridSpec(
            num_scalar_prefetch=0,
            grid=(Mp // Mt,),
            in_specs=[
                pl.BlockSpec((Mt, Kp), lambda i: (i, 0)),   # activations: stream M
                pl.BlockSpec((Kp, Ep), lambda i: (0, 0)),   # weight: resident
                pl.BlockSpec((1, Ep), lambda i: (0, 0)),    # bias: resident (f32)
            ],
            out_specs=pl.BlockSpec((Mt, Ep), lambda i: (i, 0)),
        ),
        compiler_params=pltpu.CompilerParams(
            dimension_semantics=("parallel",),              # megacore-shards M on v7x
            vmem_limit_bytes=_VMEM_LIMIT_BYTES,
            allow_input_fusion=[True, False, False],        # fuse patch transpose/cast
        ),
        cost_estimate=cost,
    )(patches, w_mat, b_mat)

    if Mp != M or Ep != E:                                  # no-op for standard configs
        out = out[:M, :E]
    return out.reshape(B, N, E)


if __name__ == "__main__":
    # Small shapes consistent with the module: img_size=16, patch_size=4,
    # in_chans=4, embed_dim=32  ->  n_patches = (16//4)**2 = 16.
    B, C, HW, P, E = 2, 4, 16, 4, 32

    key = jax.random.PRNGKey(0)
    kx, kw, kb = jax.random.split(key, 3)
    x = jax.random.normal(kx, (B, C, HW, HW), dtype=jnp.float32)
    weight = jax.random.normal(kw, (E, C, P, P), dtype=jnp.float32) * 0.02
    bias = jax.random.normal(kb, (E,), dtype=jnp.float32) * 0.02

    # Reference (plain XLA conv, NCHW) to validate semantics.
    ref = jax.lax.conv_general_dilated(
        x, weight, window_strides=(P, P), padding="VALID",
        dimension_numbers=("NCHW", "OIHW", "NCHW"),
    ) + bias[None, :, None, None]
    ref = ref.reshape(B, E, -1).transpose(0, 2, 1)

    # Default path: bf16 operands on the MXU, f32 accumulation + f32 bias add.
    out = patch_embedding(x, weight, bias, patch_size=P)
    out = jax.block_until_ready(out)
    assert out.shape == (B, (HW // P) ** 2, E), out.shape
    assert jnp.allclose(out, ref, atol=3e-2, rtol=3e-2)

    # Exact f32 path (tight tolerance) to validate the math end-to-end.
    out_f32 = patch_embedding(x, weight, bias, patch_size=P,
                              compute_dtype=jnp.float32)
    out_f32 = jax.block_until_ready(out_f32)
    assert jnp.allclose(out_f32, ref, atol=1e-4, rtol=1e-4)

    print("KERNEL_OK")
</pallas_src>

<mosaic_0001>
module attributes {stable_mosaic.version = 11 : i64} {
  func.func @_patch_embed_kernel(%arg0: i32, %arg1: memref<32x64xbf16, #tpu.memory_space<vmem>>, %arg2: memref<64x128xbf16, #tpu.memory_space<vmem>>, %arg3: memref<1x128xf32, #tpu.memory_space<vmem>>, %arg4: memref<32x128xf32, #tpu.memory_space<vmem>>) attributes {dimension_semantics = [#tpu.dimension_semantics<parallel>], iteration_bounds = array<i64: 1>, scalar_prefetch = 0 : i64, scratch_operands = 0 : i64, tpu.core_type = #tpu.core_type<tc>, window_params = [{transform_indices = @transform_0, window_bounds = array<i64: 32, 64>}, {pipeline_mode = #tpu.pipeline_mode<synchronous>, transform_indices = @transform_1, window_bounds = array<i64: 64, 128>}, {pipeline_mode = #tpu.pipeline_mode<synchronous>, transform_indices = @transform_2, window_bounds = array<i64: 1, 128>}, {transform_indices = @transform_3, window_bounds = array<i64: 32, 128>}]} {
    %c0 = arith.constant 0 : index
    %c0_0 = arith.constant 0 : index
    %0 = vector.load %arg1[%c0, %c0_0] : memref<32x64xbf16, #tpu.memory_space<vmem>>, vector<32x64xbf16>
    %c0_1 = arith.constant 0 : index
    %c0_2 = arith.constant 0 : index
    %1 = vector.load %arg2[%c0_1, %c0_2] : memref<64x128xbf16, #tpu.memory_space<vmem>>, vector<64x128xbf16>
    %cst = arith.constant dense<0.000000e+00> : vector<32x128xf32>
    %2 = tpu.matmul %0, %1, %cst {dimension_numbers = #tpu.dot_dimension_numbers<[1], [0], [0], [1], [0, 0, 1, 1], [], []>} : vector<32x64xbf16>, vector<64x128xbf16>, vector<32x128xf32> -> vector<32x128xf32>
    %c0_3 = arith.constant 0 : index
    %c0_4 = arith.constant 0 : index
    %3 = vector.load %arg3[%c0_3, %c0_4] : memref<1x128xf32, #tpu.memory_space<vmem>>, vector<1x128xf32>
    %4 = vector.broadcast %3 : vector<1x128xf32> to vector<32x128xf32>
    %5 = arith.addf %2, %4 : vector<32x128xf32>
    %c0_5 = arith.constant 0 : index
    %c0_6 = arith.constant 0 : index
    %6 = vector.load %arg4[%c0_5, %c0_6] : memref<32x128xf32, #tpu.memory_space<vmem>>, vector<32x128xf32>
    tpu.vector_store %arg4[%c0_5, %c0_6], %5 {strides = array<i32>} : memref<32x128xf32, #tpu.memory_space<vmem>>, vector<32x128xf32>,
    return
  }
  func.func @transform_0(%arg0: i32) -> (i32, i32) {
    %c0_i32 = arith.constant 0 : i32
    %c0_i32_0 = arith.constant 0 : i32
    return %arg0, %c0_i32 : i32, i32
  }
  func.func @transform_1(%arg0: i32) -> (i32, i32) {
    %c0_i32 = arith.constant 0 : i32
    %c0_i32_0 = arith.constant 0 : i32
    %c0_i32_1 = arith.constant 0 : i32
    return %c0_i32, %c0_i32_0 : i32, i32
  }
  func.func @transform_2(%arg0: i32) -> (i32, i32) {
    %c0_i32 = arith.constant 0 : i32
    %c0_i32_0 = arith.constant 0 : i32
    %c0_i32_1 = arith.constant 0 : i32
    return %c0_i32, %c0_i32_0 : i32, i32
  }
  func.func @transform_3(%arg0: i32) -> (i32, i32) {
    %c0_i32 = arith.constant 0 : i32
    %c0_i32_0 = arith.constant 0 : i32
    return %arg0, %c0_i32 : i32, i32
  }
}

</mosaic_0001>

<llo_original>
// kernel: patch_embedding.1
$region0: #{patch_embedding.1}
  #allocation0 [shape = 'u32[]', space=smem, size = 0x4, offset = 0x4, fixed_abs, tag = 'smem constant byte address 0x4 - core index']
  #allocation1 [shape = 'u32[72,128]{1,0:T(1,128)}', space=vmem, size = 0x9000, scoped, tag = 'internal scratch']
  %s0 = inlined_call_operand.vmem [shape: bf16[32,64], index: 0, kind: input, shape index: {}]
  %s1 = inlined_call_operand.vmem [shape: bf16[64,128], index: 1, kind: input, shape index: {}]
  %s2 = inlined_call_operand.vmem [shape: f32[1,128], index: 2, kind: input, shape index: {}]
  %s3 = inlined_call_operand.hbm [shape: f32[32,128], index: 3, kind: output, shape index: {}]
  %s4 = sld [smem:[#allocation0]]
  $region22: #{patch_embedding.1} parent=0
    _
  %s6 = ssub.s32 1, %s4
  %s7 = scalar_select 0, %s6, %s4
  $region1: #{patch_embedding.1} parent=0
    #allocation2 [shape = 'u8[16384]{0}', space=vmem, size = 0x4000, scoped, tag = 'output window, operand 0, single buffered']
    #allocation3 [shape = 's32[1]{0}', space=sflag, size = 0x4, scoped, tag = 'scoped memory for patch_embedding.1']
    %8 = vsyncpa [#allocation3], 0
    // Predicated region
    $region2: #{patch_embedding.1} parent=1 // pred_check
      _
    $region3: #{patch_embedding.1} parent=1 // pred_check_branch
      %10 = sbr.rel (0) target = $region5
    $region4: #{patch_embedding.1} parent=1 // pred_region
      _
    $region5: #{patch_embedding.1} parent=1 // pred_fallthru
      _
    // Predicated region
    $region6: #{patch_embedding.1} parent=1 // pred_check
      _
    $region7: #{patch_embedding.1} parent=1 // pred_check_branch
      %12 = sbr.rel (0) target = $region9
    $region8: #{patch_embedding.1} parent=1 // pred_region
      _
    $region9: #{patch_embedding.1} parent=1 // pred_fallthru
      _
    // Predicated region
    $region10: #{patch_embedding.1} parent=1 // pred_check
      _
    $region11: #{patch_embedding.1} parent=1 // pred_check_branch
      %14 = sbr.rel (0) target = $region13
    $region12: #{patch_embedding.1} parent=1 // pred_region
      _
    $region13: #{patch_embedding.1} parent=1 // pred_fallthru
      _
    %v16 = vld [vmem:[%s0] sm:$0xf]
    %v17 = vld [vmem:[%s0 + $0x4] sm:$0xf]
    %v18 = vld [vmem:[%s0 + $0x8] sm:$0xf]
    %v19 = vld [vmem:[%s0 + $0xc] sm:$0xf]
    %v20 = vld [vmem:[%s1] sm:$0xf]
    %v21 = vld [vmem:[%s1 + $0x4] sm:$0xf]
    %v22 = vld [vmem:[%s1 + $0x8] sm:$0xf]
    %v23 = vld [vmem:[%s1 + $0xc] sm:$0xf]
    %v24 = vld [vmem:[%s1 + $0x10] sm:$0xf]
    %v25 = vld [vmem:[%s1 + $0x14] sm:$0xf]
    %v26 = vld [vmem:[%s1 + $0x18] sm:$0xf]
    %v27 = vld [vmem:[%s1 + $0x1c] sm:$0xf]
    %v28 = vld [vmem:[%s2] sm:$0x1]
    %v30 = vperm.slane %v28, 0
    %v36 = vunpack.c.l.b16 %v16
    %v37 = vunpack.c.l.b16 %v17
    %v38 = vunpack.c.l.b16 %v18
    %v39 = vunpack.c.l.b16 %v19
    %v40 = vpack.c.b16 %v37, %v36
    %v41 = vpack.c.b16 %v39, %v38
    %v50 = vunpack.c.l.b16 %v20
    %v51 = vunpack.c.l.b16 %v21
    %v52 = vunpack.c.l.b16 %v22
    %v53 = vunpack.c.l.b16 %v23
    %v54 = vunpack.c.l.b16 %v24
    %v55 = vunpack.c.l.b16 %v25
    %v56 = vunpack.c.l.b16 %v26
    %v57 = vunpack.c.l.b16 %v27
    %v58 = vpack.c.b16 %v51, %v50
    %v59 = vpack.c.b16 %v53, %v52
    %v60 = vpack.c.b16 %v55, %v54
    %v61 = vpack.c.b16 %v57, %v56
    %vm66 = vcmask 523264
    %v68 = vsel %vm66, %v40, 0
    %v71 = vsel %vm66, %v41, 0
    %73 = vmatpush.bf16.msra.mxu0 0
    %74 = vmatpush.bf16.msra.mxu0 0
    %75 = vmatpush.bf16.msra.mxu0 0
    %76 = vmatpush.bf16.msra.mxu0 0
    %77 = vmatpush.bf16.msra.mxu0 %v61
    %78 = vmatpush.bf16.msra.mxu0 %v60
    %79 = vmatpush.bf16.msra.mxu0 %v59
    %80 = vmatpush.bf16.msra.mxu0 %v58
    %81 = vmatmul.bf16.gmra.mxu0 %v68
    %v82 = vpop.f32.mrf.mxu0
    %v83 = vadd.f32 %v30, %v82
    %v84 = vpop.f32.mrf.mxu0
    %v85 = vadd.f32 %v30, %v84
    %86 = vmatmul.bf16.gmra.mxu0 %v71
    %v87 = vpop.f32.mrf.mxu0
    %v88 = vadd.f32 %v30, %v87
    %v89 = vpop.f32.mrf.mxu0
    %v90 = vadd.f32 %v30, %v89
    %91 = vdwg.mxu0
    %92 = vst [vmem:[#allocation2] sm:$0xff] %v83
    %93 = vst [vmem:[#allocation2 + $0x8] sm:$0xff] %v85
    %94 = vst [vmem:[#allocation2 + $0x10] sm:$0xff] %v88
    %95 = vst [vmem:[#allocation2 + $0x18] sm:$0xff] %v90
    // Predicated region
    $region14: #{patch_embedding.1} parent=1 // pred_check
      _
    $region15: #{patch_embedding.1} parent=1 // pred_check_branch
      %97 = sbr.rel (0) target = $region17
    $region16: #{patch_embedding.1} parent=1 // pred_region
      %99 = vsyncadd [#allocation3], 0
      %s100 = sshll.u32 [#allocation2], 4
      %s101 = int_to_ptr.vmem [resolvable:$true] %s100
      %s102 = sshll.u32 %s3, 4
      %s103 = int_to_ptr.hbm [resolvable:$true] %s102
      %108 = dma.vmem_to_hbm [thread:$0]  %s101, 512, %s103, [#allocation3], 128, 128, 8
    $region17: #{patch_embedding.1} parent=1 // pred_fallthru
      _
    // Predicated region
    $region18: #{patch_embedding.1} parent=1 // pred_check
      _
    $region19: #{patch_embedding.1} parent=1 // pred_check_branch
      %110 = sbr.rel (0) target = $region21
    $region20: #{patch_embedding.1} parent=1 // pred_region
      %112 = dma.done [#allocation3], 512
    $region21: #{patch_embedding.1} parent=1 // pred_fallthru
      _
    %113 = vsyncpa [#allocation3], 1

</llo_original>
